<compile_context>
chip_gen: v6e
topology: v6e:2x2x1
jax: 0.10.0
libtpu: 0.0.40
codegen_flags: <defaults>
</compile_context>

<pallas_src>
import numpy as np
import jax
import jax.numpy as jnp
from jax.experimental import pallas as pl
from jax.experimental.pallas import tpu as pltpu  # noqa: F401  (TPU backend assumed)

# ---------------- config (small, deterministic) ----------------
B, C_IN, H, W = 2, 3, 16, 16
C_FEAT = 16
NUM_CLASSES = 8
KH = KW = 3
STRIDE = 2
H2, W2 = H // STRIDE, W // STRIDE      # conv output spatial size (8, 8)
P = H2 * W2                            # 64 conv-output pixels per image
Q = H * W                              # 256 full-resolution pixels per image
KCOL = C_IN * KH * KW                  # 27 im2col contraction size


# ---------------- host-side constants (numpy; baked into the compiled program) ----------------
def _bilinear_matrix(out_size: int, in_size: int) -> np.ndarray:
    """Interp matrix matching F.interpolate(mode='bilinear', align_corners=False)."""
    scale = in_size / out_size
    src = np.maximum((np.arange(out_size, dtype=np.float64) + 0.5) * scale - 0.5, 0.0)
    i0 = np.minimum(np.floor(src).astype(np.int64), in_size - 1)
    i1 = np.minimum(i0 + 1, in_size - 1)
    w1 = (src - i0).astype(np.float32)
    w0 = 1.0 - w1
    m = np.zeros((out_size, in_size), np.float32)
    m[np.arange(out_size), i0] += w0
    m[np.arange(out_size), i1] += w1
    return m


_RH = _bilinear_matrix(H, H2)                      # [16, 8]
_RW = _bilinear_matrix(W, W2)                      # [16, 8]
# Fused row+col interpolation acting on the flattened (h2*W2 + w2) pixel axis:
#   up[c, h*W + w] = sum_p logits[c, p] * _UKT[p, h*W + w]
_UKT = np.ascontiguousarray(np.kron(_RH, _RW).T)   # [64, 256]


# ---------------- fused Pallas kernel (single invocation, whole batch) ----------------
def fused_seg_kernel(cols_ref, w1_ref, b1_ref, w2_ref, b2_ref, ukt_ref, o_ref):
    """conv3x3/s2 + bias + ReLU -> 1x1 head -> bilinear upsample, fully in VMEM.

    cols_ref : [B*P, 27]     wrapper-side im2col of the input (inner order c, kh, kw)
    w1_ref   : [27, C_FEAT]  backbone weight (same contraction order)
    b1_ref   : [1, C_FEAT]
    w2_ref   : [NUM_CLASSES, C_FEAT]
    b2_ref   : [B*NUM_CLASSES, 1]   class bias tiled over batch rows
    ukt_ref  : [P, Q]        kron(Rh, Rw)^T upsample matrix
    o_ref    : [B*NUM_CLASSES, Q]   lane-dense (256-lane) full-resolution logits
    """
    # Conv 3x3 stride-2: ONE [128, 27] @ [27, 16] MXU matmul (im2col done in the wrapper).
    feat = jnp.dot(cols_ref[...], w1_ref[...], preferred_element_type=jnp.float32)
    feat = jnp.maximum(feat + b1_ref[...], 0.0)                       # [B*P, C_FEAT]

    # 1x1 head, produced class-major per image via NT matmuls, stacked to [B*NC, P].
    blocks = []
    for b in range(B):
        feat_b = feat[b * P:(b + 1) * P, :]                           # [P, C_FEAT] static slice
        blocks.append(jax.lax.dot_general(
            w2_ref[...], feat_b,
            dimension_numbers=(((1,), (1,)), ((), ())),
            preferred_element_type=jnp.float32))                      # [NC, P]
    logits = jnp.concatenate(blocks, axis=0) + b2_ref[...]            # [B*NC, P] = [16, 64]

    # Bilinear upsample for all images & classes in a single matmul; one unmasked store.
    o_ref[...] = jnp.dot(logits, ukt_ref[...],
                         preferred_element_type=jnp.float32)          # [16, 256]


# ---------------- JAX wrapper ----------------
def segmentation_forward(x_nchw, params):
    """Eval-mode forward of SegmentationModel: returns {'pred': [B, NC, H, W]}."""
    w1, b1, w2, b2 = params

    # Wrapper-side im2col: [B*P, 27]; column order (c, kh, kw) matches w1.reshape below.
    xp = jnp.pad(x_nchw, ((0, 0), (0, 0), (1, 1), (1, 1)))            # [B, C, H+2, W+2]
    taps = jnp.stack(
        [xp[:, :, kh:kh + STRIDE * H2:STRIDE, kw:kw + STRIDE * W2:STRIDE]
         for kh in range(KH) for kw in range(KW)], axis=-1)           # [B, C, H2, W2, 9]
    cols = taps.transpose(0, 2, 3, 1, 4).reshape(B * P, KCOL)         # [128, 27]

    w1m = w1.reshape(C_FEAT, KCOL).T                                  # [27, C_FEAT]
    w2m = w2.reshape(NUM_CLASSES, C_FEAT)                             # [NC, C_FEAT]
    b1r = b1.reshape(1, C_FEAT)                                       # [1, C_FEAT]
    b2c = jnp.tile(b2.reshape(NUM_CLASSES, 1), (B, 1))                # [B*NC, 1]
    ukt = jnp.asarray(_UKT)                                           # compile-time constant

    out = pl.pallas_call(
        fused_seg_kernel,
        out_shape=jax.ShapeDtypeStruct((B * NUM_CLASSES, Q), jnp.float32),
    )(cols, w1m, b1r, w2m, b2c, ukt)

    pred = out.reshape(B, NUM_CLASSES, H, W)                          # NCHW, like PyTorch
    return {"pred": pred}
    # TODO(synk): aux_head branch only runs in training mode; eval-mode forward implemented.


def reference_forward(x_nchw, params):
    """Pure-JAX reference for a correctness check."""
    w1, b1, w2, b2 = params
    feat = jax.lax.conv_general_dilated(
        x_nchw, w1, window_strides=(STRIDE, STRIDE), padding=((1, 1), (1, 1)),
        dimension_numbers=("NCHW", "OIHW", "NCHW"),
    ) + b1[None, :, None, None]
    feat = jnp.maximum(feat, 0.0)
    logits = jax.lax.conv_general_dilated(
        feat, w2, window_strides=(1, 1), padding="VALID",
        dimension_numbers=("NCHW", "OIHW", "NCHW"),
    ) + b2[None, :, None, None]
    return jnp.einsum("oh,pw,bchw->bcop", jnp.asarray(_RH), jnp.asarray(_RW), logits)


if __name__ == "__main__":
    key = jax.random.PRNGKey(0)
    kx, k1, k2, k3, k4 = jax.random.split(key, 5)
    x = jax.random.normal(kx, (B, C_IN, H, W), jnp.float32)

    # deterministic synthetic parameters (shapes follow the PyTorch layers)
    w1 = jax.random.normal(k1, (C_FEAT, C_IN, KH, KW), jnp.float32) * 0.1
    b1 = jax.random.normal(k2, (C_FEAT,), jnp.float32) * 0.1
    w2 = jax.random.normal(k3, (NUM_CLASSES, C_FEAT, 1, 1), jnp.float32) * 0.1
    b2 = jax.random.normal(k4, (NUM_CLASSES,), jnp.float32) * 0.1
    params = (w1, b1, w2, b2)

    out = jax.jit(segmentation_forward)(x, params)
    pred = jax.block_until_ready(out["pred"])

    ref = jax.block_until_ready(reference_forward(x, params))
    assert pred.shape == (B, NUM_CLASSES, H, W)
    assert jnp.max(jnp.abs(pred - ref)) < 1e-4

    print("KERNEL_OK")
</pallas_src>

<mosaic_0001>
module attributes {stable_mosaic.version = 11 : i64} {
  func.func @fused_seg_kernel(%arg0: memref<128x27xf32, #tpu.memory_space<vmem>>, %arg1: memref<27x16xf32, #tpu.memory_space<vmem>>, %arg2: memref<1x16xf32, #tpu.memory_space<vmem>>, %arg3: memref<8x16xf32, #tpu.memory_space<vmem>>, %arg4: memref<16x1xf32, #tpu.memory_space<vmem>>, %arg5: memref<64x256xf32, #tpu.memory_space<vmem>>, %arg6: memref<16x256xf32, #tpu.memory_space<vmem>>) attributes {dimension_semantics = [], scalar_prefetch = 0 : i64, scratch_operands = 0 : i64, tpu.core_type = #tpu.core_type<tc>} {
    %c0 = arith.constant 0 : index
    %c0_0 = arith.constant 0 : index
    %0 = vector.load %arg0[%c0, %c0_0] : memref<128x27xf32, #tpu.memory_space<vmem>>, vector<128x27xf32>
    %c0_1 = arith.constant 0 : index
    %c0_2 = arith.constant 0 : index
    %1 = vector.load %arg1[%c0_1, %c0_2] : memref<27x16xf32, #tpu.memory_space<vmem>>, vector<27x16xf32>
    %cst = arith.constant dense<0.000000e+00> : vector<128x16xf32>
    %2 = tpu.matmul %0, %1, %cst {dimension_numbers = #tpu.dot_dimension_numbers<[1], [0], [0], [1], [0, 0, 1, 1], [], []>} : vector<128x27xf32>, vector<27x16xf32>, vector<128x16xf32> -> vector<128x16xf32>
    %c0_3 = arith.constant 0 : index
    %c0_4 = arith.constant 0 : index
    %3 = vector.load %arg2[%c0_3, %c0_4] : memref<1x16xf32, #tpu.memory_space<vmem>>, vector<1x16xf32>
    %4 = vector.broadcast %3 : vector<1x16xf32> to vector<128x16xf32>
    %5 = arith.addf %2, %4 : vector<128x16xf32>
    %cst_5 = arith.constant 0.000000e+00 : f32
    %6 = vector.broadcast %cst_5 : f32 to vector<128x16xf32>
    %7 = arith.maximumf %5, %6 : vector<128x16xf32>
    %8 = vector.extract_strided_slice %7 {offsets = [0, 0], sizes = [64, 16], strides = [1, 1]} : vector<128x16xf32> to vector<64x16xf32>
    %c0_6 = arith.constant 0 : index
    %c0_7 = arith.constant 0 : index
    %9 = vector.load %arg3[%c0_6, %c0_7] : memref<8x16xf32, #tpu.memory_space<vmem>>, vector<8x16xf32>
    %cst_8 = arith.constant dense<0.000000e+00> : vector<8x64xf32>
    %10 = tpu.matmul %9, %8, %cst_8 {dimension_numbers = #tpu.dot_dimension_numbers<[1], [1], [0], [0], [0, 0, 1, 0], [], []>} : vector<8x16xf32>, vector<64x16xf32>, vector<8x64xf32> -> vector<8x64xf32>
    %11 = vector.extract_strided_slice %7 {offsets = [64, 0], sizes = [64, 16], strides = [1, 1]} : vector<128x16xf32> to vector<64x16xf32>
    %c0_9 = arith.constant 0 : index
    %c0_10 = arith.constant 0 : index
    %12 = vector.load %arg3[%c0_9, %c0_10] : memref<8x16xf32, #tpu.memory_space<vmem>>, vector<8x16xf32>
    %cst_11 = arith.constant dense<0.000000e+00> : vector<8x64xf32>
    %13 = tpu.matmul %12, %11, %cst_11 {dimension_numbers = #tpu.dot_dimension_numbers<[1], [1], [0], [0], [0, 0, 1, 0], [], []>} : vector<8x16xf32>, vector<64x16xf32>, vector<8x64xf32> -> vector<8x64xf32>
    %14 = tpu.concatenate %10, %13 in 0 : vector<8x64xf32>, vector<8x64xf32> -> vector<16x64xf32>
    %c0_12 = arith.constant 0 : index
    %c0_13 = arith.constant 0 : index
    %15 = vector.load %arg4[%c0_12, %c0_13] : memref<16x1xf32, #tpu.memory_space<vmem>>, vector<16x1xf32>
    %16 = vector.broadcast %15 : vector<16x1xf32> to vector<16x64xf32>
    %17 = arith.addf %14, %16 : vector<16x64xf32>
    %c0_14 = arith.constant 0 : index
    %c0_15 = arith.constant 0 : index
    %18 = vector.load %arg5[%c0_14, %c0_15] : memref<64x256xf32, #tpu.memory_space<vmem>>, vector<64x256xf32>
    %cst_16 = arith.constant dense<0.000000e+00> : vector<16x256xf32>
    %19 = tpu.matmul %17, %18, %cst_16 {dimension_numbers = #tpu.dot_dimension_numbers<[1], [0], [0], [1], [0, 0, 1, 1], [], []>} : vector<16x64xf32>, vector<64x256xf32>, vector<16x256xf32> -> vector<16x256xf32>
    %c0_17 = arith.constant 0 : index
    %c0_18 = arith.constant 0 : index
    %20 = vector.load %arg6[%c0_17, %c0_18] : memref<16x256xf32, #tpu.memory_space<vmem>>, vector<16x256xf32>
    tpu.vector_store %arg6[%c0_17, %c0_18], %19 {strides = array<i32>} : memref<16x256xf32, #tpu.memory_space<vmem>>, vector<16x256xf32>,
    return
  }
}

</mosaic_0001>

<llo_original>
// kernel: segmentation_forward.1
$region0: #{segmentation_forward.1}
  #allocation0 [shape = 'u32[]', space=smem, size = 0x4, offset = 0x4, fixed_abs, tag = 'smem constant byte address 0x4 - core index']
  #allocation1 [shape = 'u32[144,128]{1,0:T(1,128)}', space=vmem, size = 0x12000, scoped, tag = 'internal scratch']
  %s0 = inlined_call_operand.vmem [shape: f32[128,27], index: 0, kind: input, shape index: {}]
  %s1 = inlined_call_operand.vmem [shape: f32[27,16], index: 1, kind: input, shape index: {}]
  %s2 = inlined_call_operand.vmem [shape: f32[1,16], index: 2, kind: input, shape index: {}]
  %s3 = inlined_call_operand.vmem [shape: f32[8,16], index: 3, kind: input, shape index: {}]
  %s4 = inlined_call_operand.vmem [shape: f32[16,1], index: 4, kind: input, shape index: {}]
  %s5 = inlined_call_operand.vmem [shape: f32[64,256], index: 5, kind: input, shape index: {}]
  %s6 = inlined_call_operand.vmem [shape: f32[16,256], index: 6, kind: output, shape index: {}]
  %s7 = sld [smem:[#allocation0]]
  $region34: #{segmentation_forward.1} parent=0
    _
  %s9 = ssub.s32 1, %s7
  %s10 = scalar_select 0, %s9, %s7
  // Predicated region
  $region2: #{segmentation_forward.1} parent=0 // pred_check
    _
  $region3: #{segmentation_forward.1} parent=0 // pred_check_branch
    %12 = sbr.rel (0) target = $region5
  $region4: #{segmentation_forward.1} parent=0 // pred_region
    _
  $region5: #{segmentation_forward.1} parent=0 // pred_fallthru
    _
  // Predicated region
  $region6: #{segmentation_forward.1} parent=0 // pred_check
    _
  $region7: #{segmentation_forward.1} parent=0 // pred_check_branch
    %14 = sbr.rel (0) target = $region9
  $region8: #{segmentation_forward.1} parent=0 // pred_region
    _
  $region9: #{segmentation_forward.1} parent=0 // pred_fallthru
    _
  // Predicated region
  $region10: #{segmentation_forward.1} parent=0 // pred_check
    _
  $region11: #{segmentation_forward.1} parent=0 // pred_check_branch
    %16 = sbr.rel (0) target = $region13
  $region12: #{segmentation_forward.1} parent=0 // pred_region
    _
  $region13: #{segmentation_forward.1} parent=0 // pred_fallthru
    _
  // Predicated region
  $region14: #{segmentation_forward.1} parent=0 // pred_check
    _
  $region15: #{segmentation_forward.1} parent=0 // pred_check_branch
    %18 = sbr.rel (0) target = $region17
  $region16: #{segmentation_forward.1} parent=0 // pred_region
    _
  $region17: #{segmentation_forward.1} parent=0 // pred_fallthru
    _
  // Predicated region
  $region18: #{segmentation_forward.1} parent=0 // pred_check
    _
  $region19: #{segmentation_forward.1} parent=0 // pred_check_branch
    %20 = sbr.rel (0) target = $region21
  $region20: #{segmentation_forward.1} parent=0 // pred_region
    _
  $region21: #{segmentation_forward.1} parent=0 // pred_fallthru
    _
  // Predicated region
  $region22: #{segmentation_forward.1} parent=0 // pred_check
    _
  $region23: #{segmentation_forward.1} parent=0 // pred_check_branch
    %22 = sbr.rel (0) target = $region25
  $region24: #{segmentation_forward.1} parent=0 // pred_region
    _
  $region25: #{segmentation_forward.1} parent=0 // pred_fallthru
    _
  %v23 = vld [vmem:[%s0] sm:$0xff]
  %v24 = vld [vmem:[%s0 + $0x8] sm:$0xff]
  %v25 = vld [vmem:[%s0 + $0x10] sm:$0xff]
  %v26 = vld [vmem:[%s0 + $0x18] sm:$0xff]
  %v27 = vld [vmem:[%s0 + $0x20] sm:$0xff]
  %v28 = vld [vmem:[%s0 + $0x28] sm:$0xff]
  %v29 = vld [vmem:[%s0 + $0x30] sm:$0xff]
  %v30 = vld [vmem:[%s0 + $0x38] sm:$0xff]
  %v31 = vld [vmem:[%s0 + $0x40] sm:$0xff]
  %v32 = vld [vmem:[%s0 + $0x48] sm:$0xff]
  %v33 = vld [vmem:[%s0 + $0x50] sm:$0xff]
  %v34 = vld [vmem:[%s0 + $0x58] sm:$0xff]
  %v35 = vld [vmem:[%s0 + $0x60] sm:$0xff]
  %v36 = vld [vmem:[%s0 + $0x68] sm:$0xff]
  %v37 = vld [vmem:[%s0 + $0x70] sm:$0xff]
  %v38 = vld [vmem:[%s0 + $0x78] sm:$0xff]
  %v39 = vld [vmem:[%s1] sm:$0xff]
  %v40 = vld [vmem:[%s1 + $0x8] sm:$0xff]
  %v41 = vld [vmem:[%s1 + $0x10] sm:$0xff]
  %v42 = vld [vmem:[%s1 + $0x18] sm:$0x7]
  %v43 = vld [vmem:[%s2] sm:$0x1]
  %v45 = vlaneseq
  %v46 = vshrl.u32 %v45, 7
  %v47 = vsub.s32 0, %v46
  %v48 = vrot.slane %v43, %v47
  %vm50 = vcmask 220160
  %v52 = vsel %vm50, %v23, 0
  %v55 = vsel %vm50, %v24, 0
  %v58 = vsel %vm50, %v25, 0
  %v61 = vsel %vm50, %v26, 0
  %v64 = vsel %vm50, %v27, 0
  %v67 = vsel %vm50, %v28, 0
  %v70 = vsel %vm50, %v29, 0
  %v73 = vsel %vm50, %v30, 0
  %v76 = vsel %vm50, %v31, 0
  %v79 = vsel %vm50, %v32, 0
  %v82 = vsel %vm50, %v33, 0
  %v85 = vsel %vm50, %v34, 0
  %v88 = vsel %vm50, %v35, 0
  %v91 = vsel %vm50, %v36, 0
  %v94 = vsel %vm50, %v37, 0
  %v97 = vsel %vm50, %v38, 0
  %vm99 = vcmask 1042432
  %v101 = vsel %vm99, %v42, 0
  %103 = vmatprep.subr.mxu0 0.0
  %104 = vmatpush1.msra.mxu0 0.0
  %105 = vmatprep.subr.mxu0 0.0
  %106 = vmatpush1.msra.mxu0 0.0
  %107 = vmatprep.subr.mxu0 0.0
  %108 = vmatpush1.msra.mxu0 0.0
  %109 = vmatprep.subr.mxu0 0.0
  %110 = vmatpush1.msra.mxu0 0.0
  %111 = vmatprep.subr.mxu0 0.0
  %112 = vmatpush1.msra.mxu0 0.0
  %113 = vmatprep.subr.mxu0 0.0
  %114 = vmatpush1.msra.mxu0 0.0
  %115 = vmatprep.subr.mxu0 0.0
  %116 = vmatpush1.msra.mxu0 0.0
  %117 = vmatprep.subr.mxu0 0.0
  %118 = vmatpush1.msra.mxu0 0.0
  %119 = vmatprep.subr.mxu0 0.0
  %120 = vmatpush1.msra.mxu0 0.0
  %121 = vmatprep.subr.mxu0 0.0
  %122 = vmatpush1.msra.mxu0 0.0
  %123 = vmatprep.subr.mxu0 0.0
  %124 = vmatpush1.msra.mxu0 0.0
  %125 = vmatprep.subr.mxu0 0.0
  %126 = vmatpush1.msra.mxu0 0.0
  %127 = vmatprep.subr.mxu0 0.0
  %128 = vmatpush1.msra.mxu0 %v101
  %129 = vmatprep.subr.mxu0 0.0
  %130 = vmatpush1.msra.mxu0 %v41
  %131 = vmatprep.subr.mxu0 0.0
  %132 = vmatpush1.msra.mxu0 %v40
  %133 = vmatprep.subr.mxu0 0.0
  %134 = vmatpush1.msra.mxu0 %v39
  %135 = vmatprep.subr.mxu0 0.0
  %136 = vmatpush2.msra.mxu0 0.0
  %137 = vmatprep.subr.mxu0 0.0
  %138 = vmatpush2.msra.mxu0 0.0
  %139 = vmatprep.subr.mxu0 0.0
  %140 = vmatpush2.msra.mxu0 0.0
  %141 = vmatprep.subr.mxu0 0.0
  %142 = vmatpush2.msra.mxu0 0.0
  %143 = vmatprep.subr.mxu0 0.0
  %144 = vmatpush2.msra.mxu0 0.0
  %145 = vmatprep.subr.mxu0 0.0
  %146 = vmatpush2.msra.mxu0 0.0
  %147 = vmatprep.subr.mxu0 0.0
  %148 = vmatpush2.msra.mxu0 0.0
  %149 = vmatprep.subr.mxu0 0.0
  %150 = vmatpush2.msra.mxu0 0.0
  %151 = vmatprep.subr.mxu0 0.0
  %152 = vmatpush2.msra.mxu0 0.0
  %153 = vmatprep.subr.mxu0 0.0
  %154 = vmatpush2.msra.mxu0 0.0
  %155 = vmatprep.subr.mxu0 0.0
  %156 = vmatpush2.msra.mxu0 0.0
  %157 = vmatprep.subr.mxu0 0.0
  %158 = vmatpush2.msra.mxu0 0.0
  %159 = vmatprep.subr.mxu0 0.0
  %160 = vmatpush2.msra.mxu0 0.0
  %161 = vmatprep.subr.mxu0 0.0
  %162 = vmatpush2.msra.mxu0 0.0
  %163 = vmatprep.subr.mxu0 0.0
  %164 = vmatpush2.msra.mxu0 0.0
  %165 = vmatprep.subr.mxu0 0.0
  %166 = vmatpush2.msra.mxu0 0.0
  %167 = vmatprep.mubr.f32.mxu0 0.0
  %168 = vmatmul.mubr.f32.gmra.mxu0 %v52
  %v169 = vpop.f32.mrf.mxu0
  %v170 = vadd.f32 %v48, %v169
  %v171 = vpop.f32.mrf.mxu0
  %172 = vmatprep.mubr.f32.mxu0 0.0
  %173 = vmatmul.mubr.f32.gmra.mxu0 %v55
  %v174 = vpop.f32.mrf.mxu0
  %v175 = vadd.f32 %v48, %v174
  %v176 = vpop.f32.mrf.mxu0
  %177 = vmatprep.mubr.f32.mxu0 0.0
  %178 = vmatmul.mubr.f32.gmra.mxu0 %v58
  %v179 = vpop.f32.mrf.mxu0
  %v180 = vadd.f32 %v48, %v179
  %v181 = vpop.f32.mrf.mxu0
  %182 = vmatprep.mubr.f32.mxu0 0.0
  %183 = vmatmul.mubr.f32.gmra.mxu0 %v61
  %v184 = vpop.f32.mrf.mxu0
  %v185 = vadd.f32 %v48, %v184
  %v186 = vpop.f32.mrf.mxu0
  %187 = vmatprep.mubr.f32.mxu0 0.0
  %188 = vmatmul.mubr.f32.gmra.mxu0 %v64
  %v189 = vpop.f32.mrf.mxu0
  %v190 = vadd.f32 %v48, %v189
  %v191 = vpop.f32.mrf.mxu0
  %192 = vmatprep.mubr.f32.mxu0 0.0
  %193 = vmatmul.mubr.f32.gmra.mxu0 %v67
  %v194 = vpop.f32.mrf.mxu0
  %v195 = vadd.f32 %v48, %v194
  %v196 = vpop.f32.mrf.mxu0
  %197 = vmatprep.mubr.f32.mxu0 0.0
  %198 = vmatmul.mubr.f32.gmra.mxu0 %v70
  %v199 = vpop.f32.mrf.mxu0
  %v200 = vadd.f32 %v48, %v199
  %v201 = vpop.f32.mrf.mxu0
  %202 = vmatprep.mubr.f32.mxu0 0.0
  %203 = vmatmul.mubr.f32.gmra.mxu0 %v73
  %v204 = vpop.f32.mrf.mxu0
  %v205 = vadd.f32 %v48, %v204
  %v206 = vpop.f32.mrf.mxu0
  %207 = vmatprep.mubr.f32.mxu0 0.0
  %208 = vmatmul.mubr.f32.gmra.mxu0 %v76
  %v209 = vpop.f32.mrf.mxu0
  %v210 = vadd.f32 %v48, %v209
  %v211 = vpop.f32.mrf.mxu0
  %212 = vmatprep.mubr.f32.mxu0 0.0
  %213 = vmatmul.mubr.f32.gmra.mxu0 %v79
  %v214 = vpop.f32.mrf.mxu0
  %v215 = vadd.f32 %v48, %v214
  %v216 = vpop.f32.mrf.mxu0
  %217 = vmatprep.mubr.f32.mxu0 0.0
  %218 = vmatmul.mubr.f32.gmra.mxu0 %v82
  %v219 = vpop.f32.mrf.mxu0
  %v220 = vadd.f32 %v48, %v219
  %v221 = vpop.f32.mrf.mxu0
  %222 = vmatprep.mubr.f32.mxu0 0.0
  %223 = vmatmul.mubr.f32.gmra.mxu0 %v85
  %v224 = vpop.f32.mrf.mxu0
  %v225 = vadd.f32 %v48, %v224
  %v226 = vpop.f32.mrf.mxu0
  %227 = vmatprep.mubr.f32.mxu0 0.0
  %228 = vmatmul.mubr.f32.gmra.mxu0 %v88
  %v229 = vpop.f32.mrf.mxu0
  %v230 = vadd.f32 %v48, %v229
  %v231 = vpop.f32.mrf.mxu0
  %232 = vmatprep.mubr.f32.mxu0 0.0
  %233 = vmatmul.mubr.f32.gmra.mxu0 %v91
  %v234 = vpop.f32.mrf.mxu0
  %v235 = vadd.f32 %v48, %v234
  %v236 = vpop.f32.mrf.mxu0
  %237 = vmatprep.mubr.f32.mxu0 0.0
  %238 = vmatmul.mubr.f32.gmra.mxu0 %v94
  %v239 = vpop.f32.mrf.mxu0
  %v240 = vadd.f32 %v48, %v239
  %v241 = vpop.f32.mrf.mxu0
  %242 = vmatprep.mubr.f32.mxu0 0.0
  %243 = vmatmul.mubr.f32.gmra.mxu0 %v97
  %v244 = vpop.f32.mrf.mxu0
  %v245 = vadd.f32 %v48, %v244
  %v246 = vpop.f32.mrf.mxu0
  %247 = vdwg.mxu0
  %v248 = vmax.f32 %v170, 0.0
  %v249 = vmax.f32 %v175, 0.0
  %v250 = vmax.f32 %v180, 0.0
  %v251 = vmax.f32 %v185, 0.0
  %v252 = vmax.f32 %v190, 0.0
  %v253 = vmax.f32 %v195, 0.0
  %v254 = vmax.f32 %v200, 0.0
  %v255 = vmax.f32 %v205, 0.0
  %v256 = vmax.f32 %v210, 0.0
  %v257 = vmax.f32 %v215, 0.0
  %v258 = vmax.f32 %v220, 0.0
  %v259 = vmax.f32 %v225, 0.0
  %v260 = vmax.f32 %v230, 0.0
  %v261 = vmax.f32 %v235, 0.0
  %v262 = vmax.f32 %v240, 0.0
  %v263 = vmax.f32 %v245, 0.0
  %v264 = vld [vmem:[%s3] sm:$0xff]
  %vm265 = vcmask 130048
  %v267 = vsel %vm265, %v264, 0
  %v270 = vsel %vm265, %v248, 0
  %v273 = vsel %vm265, %v249, 0
  %v276 = vsel %vm265, %v250, 0
  %v279 = vsel %vm265, %v251, 0
  %v282 = vsel %vm265, %v252, 0
  %v285 = vsel %vm265, %v253, 0
  %v288 = vsel %vm265, %v254, 0
  %v291 = vsel %vm265, %v255, 0
  %293 = vmatprep.subr.mxu0 0.0
  %294 = vmatpush1.xpose.msra.mxu0 0.0
  %295 = vmatprep.subr.mxu0 0.0
  %296 = vmatpush1.xpose.msra.mxu0 0.0
  %297 = vmatprep.subr.mxu0 0.0
  %298 = vmatpush1.xpose.msra.mxu0 0.0
  %299 = vmatprep.subr.mxu0 0.0
  %300 = vmatpush1.xpose.msra.mxu0 0.0
  %301 = vmatprep.subr.mxu0 0.0
  %302 = vmatpush1.xpose.msra.mxu0 0.0
  %303 = vmatprep.subr.mxu0 0.0
  %304 = vmatpush1.xpose.msra.mxu0 0.0
  %305 = vmatprep.subr.mxu0 0.0
  %306 = vmatpush1.xpose.msra.mxu0 0.0
  %307 = vmatprep.subr.mxu0 0.0
  %308 = vmatpush1.xpose.msra.mxu0 0.0
  %309 = vmatprep.subr.mxu0 0.0
  %310 = vmatpush1.xpose.msra.mxu0 %v291
  %311 = vmatprep.subr.mxu0 0.0
  %312 = vmatpush1.xpose.msra.mxu0 %v288
  %313 = vmatprep.subr.mxu0 0.0
  %314 = vmatpush1.xpose.msra.mxu0 %v285
  %315 = vmatprep.subr.mxu0 0.0
  %316 = vmatpush1.xpose.msra.mxu0 %v282
  %317 = vmatprep.subr.mxu0 0.0
  %318 = vmatpush1.xpose.msra.mxu0 %v279
  %319 = vmatprep.subr.mxu0 0.0
  %320 = vmatpush1.xpose.msra.mxu0 %v276
  %321 = vmatprep.subr.mxu0 0.0
  %322 = vmatpush1.xpose.msra.mxu0 %v273
  %323 = vmatprep.subr.mxu0 0.0
  %324 = vmatpush1.xpose.msra.mxu0 %v270
  %325 = vmatprep.subr.mxu0 0.0
  %326 = vmatpush2.xpose.msra.mxu0 0.0
  %327 = vmatprep.subr.mxu0 0.0
  %328 = vmatpush2.xpose.msra.mxu0 0.0
  %329 = vmatprep.subr.mxu0 0.0
  %330 = vmatpush2.xpose.msra.mxu0 0.0
  %331 = vmatprep.subr.mxu0 0.0
  %332 = vmatpush2.xpose.msra.mxu0 0.0
  %333 = vmatprep.subr.mxu0 0.0
  %334 = vmatpush2.xpose.msra.mxu0 0.0
  %335 = vmatprep.subr.mxu0 0.0
  %336 = vmatpush2.xpose.msra.mxu0 0.0
  %337 = vmatprep.subr.mxu0 0.0
  %338 = vmatpush2.xpose.msra.mxu0 0.0
  %339 = vmatprep.subr.mxu0 0.0
  %340 = vmatpush2.xpose.msra.mxu0 0.0
  %341 = vmatprep.subr.mxu0 0.0
  %342 = vmatpush2.xpose.msra.mxu0 0.0
  %343 = vmatprep.subr.mxu0 0.0
  %344 = vmatpush2.xpose.msra.mxu0 0.0
  %345 = vmatprep.subr.mxu0 0.0
  %346 = vmatpush2.xpose.msra.mxu0 0.0
  %347 = vmatprep.subr.mxu0 0.0
  %348 = vmatpush2.xpose.msra.mxu0 0.0
  %349 = vmatprep.subr.mxu0 0.0
  %350 = vmatpush2.xpose.msra.mxu0 0.0
  %351 = vmatprep.subr.mxu0 0.0
  %352 = vmatpush2.xpose.msra.mxu0 0.0
  %353 = vmatprep.subr.mxu0 0.0
  %354 = vmatpush2.xpose.msra.mxu0 0.0
  %355 = vmatprep.subr.mxu0 0.0
  %356 = vmatpush2.xpose.msra.mxu0 0.0
  %357 = vmatprep.mubr.f32.mxu0 0.0
  %358 = vmatmul.mubr.f32.gmra.mxu0 %v267
  %v359 = vpop.f32.mrf.mxu0
  %v360 = vadd.f32 0.0, %v359
  %v361 = vpop.f32.mrf.mxu0
  %362 = vdwg.mxu0
  %v364 = vsel %vm265, %v256, 0
  %v367 = vsel %vm265, %v257, 0
  %v370 = vsel %vm265, %v258, 0
  %v373 = vsel %vm265, %v259, 0
  %v376 = vsel %vm265, %v260, 0
  %v379 = vsel %vm265, %v261, 0
  %v382 = vsel %vm265, %v262, 0
  %v385 = vsel %vm265, %v263, 0
  %387 = vmatprep.subr.mxu0 0.0
  %388 = vmatpush1.xpose.msra.mxu0 0.0
  %389 = vmatprep.subr.mxu0 0.0
  %390 = vmatpush1.xpose.msra.mxu0 0.0
  %391 = vmatprep.subr.mxu0 0.0
  %392 = vmatpush1.xpose.msra.mxu0 0.0
  %393 = vmatprep.subr.mxu0 0.0
  %394 = vmatpush1.xpose.msra.mxu0 0.0
  %395 = vmatprep.subr.mxu0 0.0
  %396 = vmatpush1.xpose.msra.mxu0 0.0
  %397 = vmatprep.subr.mxu0 0.0
  %398 = vmatpush1.xpose.msra.mxu0 0.0
  %399 = vmatprep.subr.mxu0 0.0
  %400 = vmatpush1.xpose.msra.mxu0 0.0
  %401 = vmatprep.subr.mxu0 0.0
  %402 = vmatpush1.xpose.msra.mxu0 0.0
  %403 = vmatprep.subr.mxu0 0.0
  %404 = vmatpush1.xpose.msra.mxu0 %v385
  %405 = vmatprep.subr.mxu0 0.0
  %406 = vmatpush1.xpose.msra.mxu0 %v382
  %407 = vmatprep.subr.mxu0 0.0
  %408 = vmatpush1.xpose.msra.mxu0 %v379
  %409 = vmatprep.subr.mxu0 0.0
  %410 = vmatpush1.xpose.msra.mxu0 %v376
  %411 = vmatprep.subr.mxu0 0.0
  %412 = vmatpush1.xpose.msra.mxu0 %v373
  %413 = vmatprep.subr.mxu0 0.0
  %414 = vmatpush1.xpose.msra.mxu0 %v370
  %415 = vmatprep.subr.mxu0 0.0
  %416 = vmatpush1.xpose.msra.mxu0 %v367
  %417 = vmatprep.subr.mxu0 0.0
  %418 = vmatpush1.xpose.msra.mxu0 %v364
  %419 = vmatprep.subr.mxu0 0.0
  %420 = vmatpush2.xpose.msra.mxu0 0.0
  %421 = vmatprep.subr.mxu0 0.0
  %422 = vmatpush2.xpose.msra.mxu0 0.0
  %423 = vmatprep.subr.mxu0 0.0
  %424 = vmatpush2.xpose.msra.mxu0 0.0
  %425 = vmatprep.subr.mxu0 0.0
  %426 = vmatpush2.xpose.msra.mxu0 0.0
  %427 = vmatprep.subr.mxu0 0.0
  %428 = vmatpush2.xpose.msra.mxu0 0.0
  %429 = vmatprep.subr.mxu0 0.0
  %430 = vmatpush2.xpose.msra.mxu0 0.0
  %431 = vmatprep.subr.mxu0 0.0
  %432 = vmatpush2.xpose.msra.mxu0 0.0
  %433 = vmatprep.subr.mxu0 0.0
  %434 = vmatpush2.xpose.msra.mxu0 0.0
  %435 = vmatprep.subr.mxu0 0.0
  %436 = vmatpush2.xpose.msra.mxu0 0.0
  %437 = vmatprep.subr.mxu0 0.0
  %438 = vmatpush2.xpose.msra.mxu0 0.0
  %439 = vmatprep.subr.mxu0 0.0
  %440 = vmatpush2.xpose.msra.mxu0 0.0
  %441 = vmatprep.subr.mxu0 0.0
  %442 = vmatpush2.xpose.msra.mxu0 0.0
  %443 = vmatprep.subr.mxu0 0.0
  %444 = vmatpush2.xpose.msra.mxu0 0.0
  %445 = vmatprep.subr.mxu0 0.0
  %446 = vmatpush2.xpose.msra.mxu0 0.0
  %447 = vmatprep.subr.mxu0 0.0
  %448 = vmatpush2.xpose.msra.mxu0 0.0
  %449 = vmatprep.subr.mxu0 0.0
  %450 = vmatpush2.xpose.msra.mxu0 0.0
  %451 = vmatprep.mubr.f32.mxu0 0.0
  %452 = vmatmul.mubr.f32.gmra.mxu0 %v267
  %v453 = vpop.f32.mrf.mxu0
  %v454 = vadd.f32 0.0, %v453
  %v455 = vpop.f32.mrf.mxu0
  %456 = vdwg.mxu0
  %v457 = vld [vmem:[%s4] sm:$0xff]
  %v458 = vld [vmem:[%s4 + $0x8] sm:$0xff]
  %460 = vset.pattern.permute.xlu0 0
  %461 = vperm.xlu0 %460, %v457
  %v462 = vpop.permute.xlu0 %461
  %465 = vset.pattern.permute.xlu0 0
  %466 = vperm.xlu0 %465, %v458
  %v467 = vpop.permute.xlu0 %466
  %v469 = vadd.f32 %v360, %v462
  %v470 = vadd.f32 %v454, %v467
  %v471 = vld [vmem:[%s5] sm:$0xff]
  %v472 = vld [vmem:[%s5 + $0x8] sm:$0xff]
  %v473 = vld [vmem:[%s5 + $0x10] sm:$0xff]
  %v474 = vld [vmem:[%s5 + $0x18] sm:$0xff]
  %v475 = vld [vmem:[%s5 + $0x20] sm:$0xff]
  %v476 = vld [vmem:[%s5 + $0x28] sm:$0xff]
  %v477 = vld [vmem:[%s5 + $0x30] sm:$0xff]
  %v478 = vld [vmem:[%s5 + $0x38] sm:$0xff]
  %v479 = vld [vmem:[%s5 + $0x40] sm:$0xff]
  %v480 = vld [vmem:[%s5 + $0x48] sm:$0xff]
  %v481 = vld [vmem:[%s5 + $0x50] sm:$0xff]
  %v482 = vld [vmem:[%s5 + $0x58] sm:$0xff]
  %v483 = vld [vmem:[%s5 + $0x60] sm:$0xff]
  %v484 = vld [vmem:[%s5 + $0x68] sm:$0xff]
  %v485 = vld [vmem:[%s5 + $0x70] sm:$0xff]
  %v486 = vld [vmem:[%s5 + $0x78] sm:$0xff]
  %vm487 = vcmask 523264
  %v489 = vsel %vm487, %v469, 0
  %v492 = vsel %vm487, %v470, 0
  %494 = vmatprep.subr.mxu0 0.0
  %495 = vmatpush1.msra.mxu0 0.0
  %496 = vmatprep.subr.mxu0 0.0
  %497 = vmatpush1.msra.mxu0 0.0
  %498 = vmatprep.subr.mxu0 0.0
  %499 = vmatpush1.msra.mxu0 0.0
  %500 = vmatprep.subr.mxu0 0.0
  %501 = vmatpush1.msra.mxu0 0.0
  %502 = vmatprep.subr.mxu0 0.0
  %503 = vmatpush1.msra.mxu0 0.0
  %504 = vmatprep.subr.mxu0 0.0
  %505 = vmatpush1.msra.mxu0 0.0
  %506 = vmatprep.subr.mxu0 0.0
  %507 = vmatpush1.msra.mxu0 0.0
  %508 = vmatprep.subr.mxu0 0.0
  %509 = vmatpush1.msra.mxu0 0.0
  %510 = vmatprep.subr.mxu0 %v486
  %511 = vmatpush1.msra.mxu0 %v485
  %512 = vmatprep.subr.mxu0 %v484
  %513 = vmatpush1.msra.mxu0 %v483
  %514 = vmatprep.subr.mxu0 %v482
  %515 = vmatpush1.msra.mxu0 %v481
  %516 = vmatprep.subr.mxu0 %v480
  %517 = vmatpush1.msra.mxu0 %v479
  %518 = vmatprep.subr.mxu0 %v478
  %519 = vmatpush1.msra.mxu0 %v477
  %520 = vmatprep.subr.mxu0 %v476
  %521 = vmatpush1.msra.mxu0 %v475
  %522 = vmatprep.subr.mxu0 %v474
  %523 = vmatpush1.msra.mxu0 %v473
  %524 = vmatprep.subr.mxu0 %v472
  %525 = vmatpush1.msra.mxu0 %v471
  %526 = vmatprep.subr.mxu0 0.0
  %527 = vmatpush2.msra.mxu0 0.0
  %528 = vmatprep.subr.mxu0 0.0
  %529 = vmatpush2.msra.mxu0 0.0
  %530 = vmatprep.subr.mxu0 0.0
  %531 = vmatpush2.msra.mxu0 0.0
  %532 = vmatprep.subr.mxu0 0.0
  %533 = vmatpush2.msra.mxu0 0.0
  %534 = vmatprep.subr.mxu0 0.0
  %535 = vmatpush2.msra.mxu0 0.0
  %536 = vmatprep.subr.mxu0 0.0
  %537 = vmatpush2.msra.mxu0 0.0
  %538 = vmatprep.subr.mxu0 0.0
  %539 = vmatpush2.msra.mxu0 0.0
  %540 = vmatprep.subr.mxu0 0.0
  %541 = vmatpush2.msra.mxu0 0.0
  %542 = vmatprep.subr.mxu0 0.0
  %543 = vmatpush2.msra.mxu0 0.0
  %544 = vmatprep.subr.mxu0 0.0
  %545 = vmatpush2.msra.mxu0 0.0
  %546 = vmatprep.subr.mxu0 0.0
  %547 = vmatpush2.msra.mxu0 0.0
  %548 = vmatprep.subr.mxu0 0.0
  %549 = vmatpush2.msra.mxu0 0.0
  %550 = vmatprep.subr.mxu0 0.0
  %551 = vmatpush2.msra.mxu0 0.0
  %552 = vmatprep.subr.mxu0 0.0
  %553 = vmatpush2.msra.mxu0 0.0
  %554 = vmatprep.subr.mxu0 0.0
  %555 = vmatpush2.msra.mxu0 0.0
  %556 = vmatprep.subr.mxu0 0.0
  %557 = vmatpush2.msra.mxu0 0.0
  %558 = vmatprep.mubr.f32.mxu0 0.0
  %559 = vmatmul.mubr.f32.gmra.mxu0 %v489
  %v560 = vpop.f32.mrf.mxu0
  %v561 = vadd.f32 0.0, %v560
  %v562 = vpop.f32.mrf.mxu0
  %v563 = vadd.f32 0.0, %v562
  %564 = vmatprep.mubr.f32.mxu0 0.0
  %565 = vmatmul.mubr.f32.gmra.mxu0 %v492
  %v566 = vpop.f32.mrf.mxu0
  %v567 = vadd.f32 0.0, %v566
  %v568 = vpop.f32.mrf.mxu0
  %v569 = vadd.f32 0.0, %v568
  %570 = vdwg.mxu0
  %571 = vst [vmem:[%s6] sm:$0xff] %v561
  %572 = vst [vmem:[%s6 + $0x8] sm:$0xff] %v563
  %573 = vst [vmem:[%s6 + $0x10] sm:$0xff] %v567
  %574 = vst [vmem:[%s6 + $0x18] sm:$0xff] %v569
  // Predicated region
  $region26: #{segmentation_forward.1} parent=0 // pred_check
    _
  $region27: #{segmentation_forward.1} parent=0 // pred_check_branch
    %576 = sbr.rel (0) target = $region29
  $region28: #{segmentation_forward.1} parent=0 // pred_region
    _
  $region29: #{segmentation_forward.1} parent=0 // pred_fallthru
    _
  // Predicated region
  $region30: #{segmentation_forward.1} parent=0 // pred_check
    _
  $region31: #{segmentation_forward.1} parent=0 // pred_check_branch
    %578 = sbr.rel (0) target = $region33
  $region32: #{segmentation_forward.1} parent=0 // pred_region
    _
  $region33: #{segmentation_forward.1} parent=0 // pred_fallthru
    _

</llo_original>
